<compile_context>
chip_gen: v6e
topology: v6e:2x2x1
jax: 0.10.0
libtpu: 0.0.40
codegen_flags: <defaults>
</compile_context>

<pallas_src>
import jax
import jax.numpy as jnp
from jax.experimental import pallas as pl
from jax.experimental.pallas import tpu as pltpu

IN_DIM = 28 * 28          # 784
HIDDEN_DIM = 128
LATENT_DIM = 20
OUT_PAD = 128             # lane-dense padded width for mu|sigma (2*20 -> 128)
BATCH = 8                 # small demo batch


def encoder_kernel(x_ref, w_ref, b_ref, out_ref):
    # Single fused affine layer:
    #   f32 x tile -> bf16 cast (VPU) -> MXU matmul vs. (784, 128) bf16 fused
    #   weight with f32 accumulation -> f32 bias add -> bf16 lane-dense store.
    x = x_ref[...].astype(jnp.bfloat16)
    acc = jnp.dot(x, w_ref[...], preferred_element_type=jnp.float32) + b_ref[...]
    out_ref[...] = acc.astype(out_ref.dtype)


@jax.jit
def encoder_forward(x, params):
    """x: (B, 784) float32. Returns (mu, sigma), each (B, 20) float32."""
    B = x.shape[0]
    # Tile choice: biggest sensible batch tile. VMEM footprint per step is
    # < 1 MiB, so the only hard constraint is sublane (8) alignment. Small
    # batches -> one grid step (no per-step overhead on single-TC v5e/v6e);
    # large batches -> 256-row tiles, an even grid that the "parallel" axis
    # shards across v7x's two TensorCores.
    tm = 256 if B >= 256 else ((B + 7) // 8) * 8
    n_tiles = pl.cdiv(B, tm)
    b_pad = n_tiles * tm
    if b_pad != B:
        x = jnp.pad(x, ((0, b_pad - B), (0, 0)))

    out = pl.pallas_call(
        encoder_kernel,
        out_shape=jax.ShapeDtypeStruct((b_pad, OUT_PAD), jnp.bfloat16),
        grid=(n_tiles,),
        in_specs=[
            pl.BlockSpec((tm, IN_DIM), lambda i: (i, 0)),        # x tile (full K)
            pl.BlockSpec((IN_DIM, OUT_PAD), lambda i: (0, 0)),   # fused weight (resident)
            pl.BlockSpec((1, OUT_PAD), lambda i: (0, 0)),        # fused bias (resident)
        ],
        out_specs=pl.BlockSpec((tm, OUT_PAD), lambda i: (i, 0)),
        compiler_params=pltpu.CompilerParams(
            dimension_semantics=("parallel",)),
    )(x, params["w_fused"], params["b_fused"])

    mu = out[:B, :LATENT_DIM].astype(jnp.float32)
    sigma = out[:B, LATENT_DIM:2 * LATENT_DIM].astype(jnp.float32)
    return mu, sigma


def init_params(key):
    """PyTorch nn.Linear-like uniform init. Returns both the raw f32 params
    (for the PyTorch-semantics reference) and the fused/padded kernel params:
      w_fused = w1 @ [w_mu|w_sig]  (784, 40) -> lane-padded (784, 128), bf16
      b_fused = b1 @ [w_mu|w_sig] + [b_mu|b_sig]  -> (1, 128), f32
    Fusion is done in f32; only the final fused weight is cast to bf16."""
    k1, k2, k3, k4, k5, k6 = jax.random.split(key, 6)

    def linear(kw, kb, fan_in, fan_out):
        bound = 1.0 / jnp.sqrt(fan_in)
        w = jax.random.uniform(kw, (fan_in, fan_out), jnp.float32, -bound, bound)
        b = jax.random.uniform(kb, (1, fan_out), jnp.float32, -bound, bound)
        return w, b

    w1, b1 = linear(k1, k2, IN_DIM, HIDDEN_DIM)        # (784, 128), (1, 128)
    wmu, bmu = linear(k3, k4, HIDDEN_DIM, LATENT_DIM)  # (128, 20),  (1, 20)
    wsig, bsig = linear(k5, k6, HIDDEN_DIM, LATENT_DIM)

    w2 = jnp.concatenate([wmu, wsig], axis=1)          # (128, 40)
    b2 = jnp.concatenate([bmu, bsig], axis=1)          # (1, 40)

    w_fused = w1 @ w2                                  # (784, 40), exact f32
    b_fused = b1 @ w2 + b2                             # (1, 40),  exact f32

    pad = OUT_PAD - 2 * LATENT_DIM
    w_fused_p = jnp.pad(w_fused, ((0, 0), (0, pad))).astype(jnp.bfloat16)
    b_fused_p = jnp.pad(b_fused, ((0, 0), (0, pad)))   # stays f32

    raw = {"w1": w1, "b1": b1, "wmu": wmu, "bmu": bmu, "wsig": wsig, "bsig": bsig}
    fused = {"w_fused": w_fused_p, "b_fused": b_fused_p}
    return fused, raw


def encoder_reference(x, raw):
    """Pure-f32 reference mirroring the original PyTorch module (unfused)."""
    h = x @ raw["w1"] + raw["b1"]
    mu = h @ raw["wmu"] + raw["bmu"]
    sigma = h @ raw["wsig"] + raw["bsig"]
    return mu, sigma


if __name__ == "__main__":
    key = jax.random.PRNGKey(0)
    kx, kp = jax.random.split(key)
    x = jax.random.normal(kx, (BATCH, IN_DIM), jnp.float32)
    params, raw_params = init_params(kp)

    mu, sigma = encoder_forward(x, params)
    mu, sigma = jax.block_until_ready((mu, sigma))

    mu_ref, sigma_ref = encoder_reference(x, raw_params)
    assert mu.shape == (BATCH, LATENT_DIM) and sigma.shape == (BATCH, LATENT_DIM)
    # Kernel uses bf16 MXU operands + bf16 output; reference is pure f32
    # PyTorch semantics -> tolerance set to bf16 rounding scale.
    assert jnp.allclose(mu, mu_ref, atol=1e-2, rtol=1e-2)
    assert jnp.allclose(sigma, sigma_ref, atol=1e-2, rtol=1e-2)

    print("KERNEL_OK")
</pallas_src>

<mosaic_0001>
module attributes {stable_mosaic.version = 11 : i64} {
  func.func @encoder_kernel(%arg0: i32, %arg1: memref<8x784xf32, #tpu.memory_space<vmem>>, %arg2: memref<784x128xbf16, #tpu.memory_space<vmem>>, %arg3: memref<1x128xf32, #tpu.memory_space<vmem>>, %arg4: memref<8x128xbf16, #tpu.memory_space<vmem>>) attributes {dimension_semantics = [#tpu.dimension_semantics<parallel>], iteration_bounds = array<i64: 1>, scalar_prefetch = 0 : i64, scratch_operands = 0 : i64, tpu.core_type = #tpu.core_type<tc>, window_params = [{transform_indices = @transform_0, window_bounds = array<i64: 8, 784>}, {pipeline_mode = #tpu.pipeline_mode<synchronous>, transform_indices = @transform_1, window_bounds = array<i64: 784, 128>}, {pipeline_mode = #tpu.pipeline_mode<synchronous>, transform_indices = @transform_2, window_bounds = array<i64: 1, 128>}, {transform_indices = @transform_3, window_bounds = array<i64: 8, 128>}]} {
    %c0 = arith.constant 0 : index
    %c0_0 = arith.constant 0 : index
    %0 = vector.load %arg1[%c0, %c0_0] : memref<8x784xf32, #tpu.memory_space<vmem>>, vector<8x784xf32>
    %1 = arith.truncf %0 : vector<8x784xf32> to vector<8x784xbf16>
    %c0_1 = arith.constant 0 : index
    %c0_2 = arith.constant 0 : index
    %2 = vector.load %arg2[%c0_1, %c0_2] : memref<784x128xbf16, #tpu.memory_space<vmem>>, vector<784x128xbf16>
    %cst = arith.constant dense<0.000000e+00> : vector<8x128xf32>
    %3 = tpu.matmul %1, %2, %cst {dimension_numbers = #tpu.dot_dimension_numbers<[1], [0], [0], [1], [0, 0, 1, 1], [], []>} : vector<8x784xbf16>, vector<784x128xbf16>, vector<8x128xf32> -> vector<8x128xf32>
    %c0_3 = arith.constant 0 : index
    %c0_4 = arith.constant 0 : index
    %4 = vector.load %arg3[%c0_3, %c0_4] : memref<1x128xf32, #tpu.memory_space<vmem>>, vector<1x128xf32>
    %5 = vector.broadcast %4 : vector<1x128xf32> to vector<8x128xf32>
    %6 = arith.addf %3, %5 : vector<8x128xf32>
    %7 = arith.truncf %6 : vector<8x128xf32> to vector<8x128xbf16>
    %c0_5 = arith.constant 0 : index
    %c0_6 = arith.constant 0 : index
    %8 = vector.load %arg4[%c0_5, %c0_6] : memref<8x128xbf16, #tpu.memory_space<vmem>>, vector<8x128xbf16>
    tpu.vector_store %arg4[%c0_5, %c0_6], %7 {strides = array<i32>} : memref<8x128xbf16, #tpu.memory_space<vmem>>, vector<8x128xbf16>,
    return
  }
  func.func @transform_0(%arg0: i32) -> (i32, i32) {
    %c0_i32 = arith.constant 0 : i32
    %c0_i32_0 = arith.constant 0 : i32
    return %arg0, %c0_i32 : i32, i32
  }
  func.func @transform_1(%arg0: i32) -> (i32, i32) {
    %c0_i32 = arith.constant 0 : i32
    %c0_i32_0 = arith.constant 0 : i32
    %c0_i32_1 = arith.constant 0 : i32
    return %c0_i32, %c0_i32_0 : i32, i32
  }
  func.func @transform_2(%arg0: i32) -> (i32, i32) {
    %c0_i32 = arith.constant 0 : i32
    %c0_i32_0 = arith.constant 0 : i32
    %c0_i32_1 = arith.constant 0 : i32
    return %c0_i32, %c0_i32_0 : i32, i32
  }
  func.func @transform_3(%arg0: i32) -> (i32, i32) {
    %c0_i32 = arith.constant 0 : i32
    %c0_i32_0 = arith.constant 0 : i32
    return %arg0, %c0_i32 : i32, i32
  }
}

</mosaic_0001>

<llo_original>
// kernel: encoder_forward.1
$region0: #{encoder_forward.1}
  #allocation0 [shape = 'u32[]', space=smem, size = 0x4, offset = 0x4, fixed_abs, tag = 'smem constant byte address 0x4 - core index']
  #allocation1 [shape = 'u32[144,128]{1,0:T(1,128)}', space=vmem, size = 0x12000, scoped, tag = 'internal scratch']
  %s0 = inlined_call_operand.hbm [shape: f32[8,784], index: 0, kind: input, shape index: {}]
  %s1 = inlined_call_operand.hbm [shape: bf16[784,128], index: 1, kind: input, shape index: {}]
  %s2 = inlined_call_operand.vmem [shape: f32[1,128], index: 2, kind: input, shape index: {}]
  %s3 = inlined_call_operand.vmem [shape: bf16[8,128], index: 3, kind: output, shape index: {}]
  %s4 = sld [smem:[#allocation0]]
  $region30: #{encoder_forward.1} parent=0
    _
  %s6 = ssub.s32 1, %s4
  %s7 = scalar_select 0, %s6, %s4
  $region1: #{encoder_forward.1} parent=0
    #allocation2 [shape = 'u8[28672]{0}', space=vmem, size = 0x7000, scoped, tag = 'input window, operand 0, single buffered']
    #allocation3 [shape = 's32[1]{0}', space=sflag, size = 0x4, scoped, tag = 'scoped memory for encoder_forward.1']
    #allocation4 [shape = 'u8[200704]{0}', space=vmem, size = 0x31000, scoped, tag = 'input window, operand 1, single buffered']
    #allocation5 [shape = 's32[1]{0}', space=sflag, size = 0x4, scoped, tag = 'scoped memory for encoder_forward.1']
    %8 = vsyncpa [#allocation3], 0
    %9 = vsyncpa [#allocation5], 0
    // Predicated region
    $region2: #{encoder_forward.1} parent=1 // pred_check
      _
    $region3: #{encoder_forward.1} parent=1 // pred_check_branch
      %11 = sbr.rel (0) target = $region5
    $region4: #{encoder_forward.1} parent=1 // pred_region
      %s13 = ssub.s32 896, 896
      %14 = vsyncadd [#allocation3], %s13
      %s16 = sshll.u32 [#allocation2], 4
      %s17 = int_to_ptr.vmem [resolvable:$true] %s16
      %19 = dma.hbm_to_vmem [thread:$0]  %s0, 896, %s17, [#allocation3]
    $region5: #{encoder_forward.1} parent=1 // pred_fallthru
      _
    // Predicated region
    $region6: #{encoder_forward.1} parent=1 // pred_check
      _
    $region7: #{encoder_forward.1} parent=1 // pred_check_branch
      %21 = sbr.rel (0) target = $region9
    $region8: #{encoder_forward.1} parent=1 // pred_region
      %s23 = ssub.s32 6272, 6272
      %24 = vsyncadd [#allocation5], %s23
      %s25 = sshll.u32 [#allocation4], 4
      %s26 = int_to_ptr.vmem [resolvable:$true] %s25
      %31 = dma.hbm_to_vmem [thread:$0]  %s1, 6272, %s26, [#allocation5], 64, 64, 4
    $region9: #{encoder_forward.1} parent=1 // pred_fallthru
      _
    // Predicated region
    $region10: #{encoder_forward.1} parent=1 // pred_check
      _
    $region11: #{encoder_forward.1} parent=1 // pred_check_branch
      %33 = sbr.rel (0) target = $region13
    $region12: #{encoder_forward.1} parent=1 // pred_region
      _
    $region13: #{encoder_forward.1} parent=1 // pred_fallthru
      _
    // Predicated region
    $region14: #{encoder_forward.1} parent=1 // pred_check
      _
    $region15: #{encoder_forward.1} parent=1 // pred_check_branch
      %35 = sbr.rel (0) target = $region17
    $region16: #{encoder_forward.1} parent=1 // pred_region
      %36 = dma.done [#allocation3], 896
    $region17: #{encoder_forward.1} parent=1 // pred_fallthru
      _
    // Predicated region
    $region18: #{encoder_forward.1} parent=1 // pred_check
      _
    $region19: #{encoder_forward.1} parent=1 // pred_check_branch
      %38 = sbr.rel (0) target = $region21
    $region20: #{encoder_forward.1} parent=1 // pred_region
      %39 = dma.done [#allocation5], 6272
    $region21: #{encoder_forward.1} parent=1 // pred_fallthru
      _
    %v41 = vld [vmem:[#allocation2] sm:$0xff]
    %v42 = vld [vmem:[#allocation2 + $0x8] sm:$0xff]
    %v43 = vld [vmem:[#allocation2 + $0x10] sm:$0xff]
    %v44 = vld [vmem:[#allocation2 + $0x18] sm:$0xff]
    %v45 = vld [vmem:[#allocation2 + $0x20] sm:$0xff]
    %v46 = vld [vmem:[#allocation2 + $0x28] sm:$0xff]
    %v47 = vld [vmem:[#allocation2 + $0x30] sm:$0xff]
    %v48 = vpack.c.bf16 %v41, %v41
    %v49 = vpack.c.bf16 %v42, %v42
    %v50 = vpack.c.bf16 %v43, %v43
    %v51 = vpack.c.bf16 %v44, %v44
    %v52 = vpack.c.bf16 %v45, %v45
    %v53 = vpack.c.bf16 %v46, %v46
    %v54 = vpack.c.bf16 %v47, %v47
    %v55 = vld [vmem:[#allocation4] sm:$0xf]
    %v56 = vld [vmem:[#allocation4 + $0x4] sm:$0xf]
    %v57 = vld [vmem:[#allocation4 + $0x8] sm:$0xf]
    %v58 = vld [vmem:[#allocation4 + $0xc] sm:$0xf]
    %v59 = vld [vmem:[#allocation4 + $0x10] sm:$0xf]
    %v60 = vld [vmem:[#allocation4 + $0x14] sm:$0xf]
    %v61 = vld [vmem:[#allocation4 + $0x18] sm:$0xf]
    %v62 = vld [vmem:[#allocation4 + $0x1c] sm:$0xf]
    %v63 = vld [vmem:[#allocation4 + $0x20] sm:$0xf]
    %v64 = vld [vmem:[#allocation4 + $0x24] sm:$0xf]
    %v65 = vld [vmem:[#allocation4 + $0x28] sm:$0xf]
    %v66 = vld [vmem:[#allocation4 + $0x2c] sm:$0xf]
    %v67 = vld [vmem:[#allocation4 + $0x30] sm:$0xf]
    %v68 = vld [vmem:[#allocation4 + $0x34] sm:$0xf]
    %v69 = vld [vmem:[#allocation4 + $0x38] sm:$0xf]
    %v70 = vld [vmem:[#allocation4 + $0x3c] sm:$0xf]
    %v71 = vld [vmem:[#allocation4 + $0x40] sm:$0xf]
    %v72 = vld [vmem:[#allocation4 + $0x44] sm:$0xf]
    %v73 = vld [vmem:[#allocation4 + $0x48] sm:$0xf]
    %v74 = vld [vmem:[#allocation4 + $0x4c] sm:$0xf]
    %v75 = vld [vmem:[#allocation4 + $0x50] sm:$0xf]
    %v76 = vld [vmem:[#allocation4 + $0x54] sm:$0xf]
    %v77 = vld [vmem:[#allocation4 + $0x58] sm:$0xf]
    %v78 = vld [vmem:[#allocation4 + $0x5c] sm:$0xf]
    %v79 = vld [vmem:[#allocation4 + $0x60] sm:$0xf]
    %v80 = vld [vmem:[#allocation4 + $0x64] sm:$0xf]
    %v81 = vld [vmem:[#allocation4 + $0x68] sm:$0xf]
    %v82 = vld [vmem:[#allocation4 + $0x6c] sm:$0xf]
    %v83 = vld [vmem:[#allocation4 + $0x70] sm:$0xf]
    %v84 = vld [vmem:[#allocation4 + $0x74] sm:$0xf]
    %v85 = vld [vmem:[#allocation4 + $0x78] sm:$0xf]
    %v86 = vld [vmem:[#allocation4 + $0x7c] sm:$0xf]
    %v87 = vld [vmem:[#allocation4 + $0x80] sm:$0xf]
    %v88 = vld [vmem:[#allocation4 + $0x84] sm:$0xf]
    %v89 = vld [vmem:[#allocation4 + $0x88] sm:$0xf]
    %v90 = vld [vmem:[#allocation4 + $0x8c] sm:$0xf]
    %v91 = vld [vmem:[#allocation4 + $0x90] sm:$0xf]
    %v92 = vld [vmem:[#allocation4 + $0x94] sm:$0xf]
    %v93 = vld [vmem:[#allocation4 + $0x98] sm:$0xf]
    %v94 = vld [vmem:[#allocation4 + $0x9c] sm:$0xf]
    %v95 = vld [vmem:[#allocation4 + $0xa0] sm:$0xf]
    %v96 = vld [vmem:[#allocation4 + $0xa4] sm:$0xf]
    %v97 = vld [vmem:[#allocation4 + $0xa8] sm:$0xf]
    %v98 = vld [vmem:[#allocation4 + $0xac] sm:$0xf]
    %v99 = vld [vmem:[#allocation4 + $0xb0] sm:$0xf]
    %v100 = vld [vmem:[#allocation4 + $0xb4] sm:$0xf]
    %v101 = vld [vmem:[#allocation4 + $0xb8] sm:$0xf]
    %v102 = vld [vmem:[#allocation4 + $0xbc] sm:$0xf]
    %v103 = vld [vmem:[#allocation4 + $0xc0] sm:$0xf]
    %v104 = vld [vmem:[#allocation4 + $0xc4] sm:$0xf]
    %v105 = vld [vmem:[#allocation4 + $0xc8] sm:$0xf]
    %v106 = vld [vmem:[#allocation4 + $0xcc] sm:$0xf]
    %v107 = vld [vmem:[#allocation4 + $0xd0] sm:$0xf]
    %v108 = vld [vmem:[#allocation4 + $0xd4] sm:$0xf]
    %v109 = vld [vmem:[#allocation4 + $0xd8] sm:$0xf]
    %v110 = vld [vmem:[#allocation4 + $0xdc] sm:$0xf]
    %v111 = vld [vmem:[#allocation4 + $0xe0] sm:$0xf]
    %v112 = vld [vmem:[#allocation4 + $0xe4] sm:$0xf]
    %v113 = vld [vmem:[#allocation4 + $0xe8] sm:$0xf]
    %v114 = vld [vmem:[#allocation4 + $0xec] sm:$0xf]
    %v115 = vld [vmem:[#allocation4 + $0xf0] sm:$0xf]
    %v116 = vld [vmem:[#allocation4 + $0xf4] sm:$0xf]
    %v117 = vld [vmem:[#allocation4 + $0xf8] sm:$0xf]
    %v118 = vld [vmem:[#allocation4 + $0xfc] sm:$0xf]
    %v119 = vld [vmem:[#allocation4 + $0x100] sm:$0xf]
    %v120 = vld [vmem:[#allocation4 + $0x104] sm:$0xf]
    %v121 = vld [vmem:[#allocation4 + $0x108] sm:$0xf]
    %v122 = vld [vmem:[#allocation4 + $0x10c] sm:$0xf]
    %v123 = vld [vmem:[#allocation4 + $0x110] sm:$0xf]
    %v124 = vld [vmem:[#allocation4 + $0x114] sm:$0xf]
    %v125 = vld [vmem:[#allocation4 + $0x118] sm:$0xf]
    %v126 = vld [vmem:[#allocation4 + $0x11c] sm:$0xf]
    %v127 = vld [vmem:[#allocation4 + $0x120] sm:$0xf]
    %v128 = vld [vmem:[#allocation4 + $0x124] sm:$0xf]
    %v129 = vld [vmem:[#allocation4 + $0x128] sm:$0xf]
    %v130 = vld [vmem:[#allocation4 + $0x12c] sm:$0xf]
    %v131 = vld [vmem:[#allocation4 + $0x130] sm:$0xf]
    %v132 = vld [vmem:[#allocation4 + $0x134] sm:$0xf]
    %v133 = vld [vmem:[#allocation4 + $0x138] sm:$0xf]
    %v134 = vld [vmem:[#allocation4 + $0x13c] sm:$0xf]
    %v135 = vld [vmem:[#allocation4 + $0x140] sm:$0xf]
    %v136 = vld [vmem:[#allocation4 + $0x144] sm:$0xf]
    %v137 = vld [vmem:[#allocation4 + $0x148] sm:$0xf]
    %v138 = vld [vmem:[#allocation4 + $0x14c] sm:$0xf]
    %v139 = vld [vmem:[#allocation4 + $0x150] sm:$0xf]
    %v140 = vld [vmem:[#allocation4 + $0x154] sm:$0xf]
    %v141 = vld [vmem:[#allocation4 + $0x158] sm:$0xf]
    %v142 = vld [vmem:[#allocation4 + $0x15c] sm:$0xf]
    %v143 = vld [vmem:[#allocation4 + $0x160] sm:$0xf]
    %v144 = vld [vmem:[#allocation4 + $0x164] sm:$0xf]
    %v145 = vld [vmem:[#allocation4 + $0x168] sm:$0xf]
    %v146 = vld [vmem:[#allocation4 + $0x16c] sm:$0xf]
    %v147 = vld [vmem:[#allocation4 + $0x170] sm:$0xf]
    %v148 = vld [vmem:[#allocation4 + $0x174] sm:$0xf]
    %v149 = vld [vmem:[#allocation4 + $0x178] sm:$0xf]
    %v150 = vld [vmem:[#allocation4 + $0x17c] sm:$0xf]
    %v151 = vld [vmem:[#allocation4 + $0x180] sm:$0xf]
    %v152 = vld [vmem:[#allocation4 + $0x184] sm:$0xf]
    %v153 = vld [vmem:[%s2] sm:$0x1]
    %v155 = vlaneseq
    %v156 = vshrl.u32 %v155, 7
    %v157 = vsub.s32 0, %v156
    %v158 = vrot.slane %v153, %v157
    %v258 = vunpack.c.l.b16 %v55
    %v259 = vunpack.c.l.b16 %v56
    %v260 = vunpack.c.l.b16 %v57
    %v261 = vunpack.c.l.b16 %v58
    %v262 = vunpack.c.l.b16 %v59
    %v263 = vunpack.c.l.b16 %v60
    %v264 = vunpack.c.l.b16 %v61
    %v265 = vunpack.c.l.b16 %v62
    %v266 = vunpack.c.l.b16 %v63
    %v267 = vunpack.c.l.b16 %v64
    %v268 = vunpack.c.l.b16 %v65
    %v269 = vunpack.c.l.b16 %v66
    %v270 = vunpack.c.l.b16 %v67
    %v271 = vunpack.c.l.b16 %v68
    %v272 = vunpack.c.l.b16 %v69
    %v273 = vunpack.c.l.b16 %v70
    %v274 = vunpack.c.l.b16 %v71
    %v275 = vunpack.c.l.b16 %v72
    %v276 = vunpack.c.l.b16 %v73
    %v277 = vunpack.c.l.b16 %v74
    %v278 = vunpack.c.l.b16 %v75
    %v279 = vunpack.c.l.b16 %v76
    %v280 = vunpack.c.l.b16 %v77
    %v281 = vunpack.c.l.b16 %v78
    %v282 = vunpack.c.l.b16 %v79
    %v283 = vunpack.c.l.b16 %v80
    %v284 = vunpack.c.l.b16 %v81
    %v285 = vunpack.c.l.b16 %v82
    %v286 = vunpack.c.l.b16 %v83
    %v287 = vunpack.c.l.b16 %v84
    %v288 = vunpack.c.l.b16 %v85
    %v289 = vunpack.c.l.b16 %v86
    %v290 = vunpack.c.l.b16 %v87
    %v291 = vunpack.c.l.b16 %v88
    %v292 = vunpack.c.l.b16 %v89
    %v293 = vunpack.c.l.b16 %v90
    %v294 = vunpack.c.l.b16 %v91
    %v295 = vunpack.c.l.b16 %v92
    %v296 = vunpack.c.l.b16 %v93
    %v297 = vunpack.c.l.b16 %v94
    %v298 = vunpack.c.l.b16 %v95
    %v299 = vunpack.c.l.b16 %v96
    %v300 = vunpack.c.l.b16 %v97
    %v301 = vunpack.c.l.b16 %v98
    %v302 = vunpack.c.l.b16 %v99
    %v303 = vunpack.c.l.b16 %v100
    %v304 = vunpack.c.l.b16 %v101
    %v305 = vunpack.c.l.b16 %v102
    %v306 = vunpack.c.l.b16 %v103
    %v307 = vunpack.c.l.b16 %v104
    %v308 = vunpack.c.l.b16 %v105
    %v309 = vunpack.c.l.b16 %v106
    %v310 = vunpack.c.l.b16 %v107
    %v311 = vunpack.c.l.b16 %v108
    %v312 = vunpack.c.l.b16 %v109
    %v313 = vunpack.c.l.b16 %v110
    %v314 = vunpack.c.l.b16 %v111
    %v315 = vunpack.c.l.b16 %v112
    %v316 = vunpack.c.l.b16 %v113
    %v317 = vunpack.c.l.b16 %v114
    %v318 = vunpack.c.l.b16 %v115
    %v319 = vunpack.c.l.b16 %v116
    %v320 = vunpack.c.l.b16 %v117
    %v321 = vunpack.c.l.b16 %v118
    %v322 = vunpack.c.l.b16 %v119
    %v323 = vunpack.c.l.b16 %v120
    %v324 = vunpack.c.l.b16 %v121
    %v325 = vunpack.c.l.b16 %v122
    %v326 = vunpack.c.l.b16 %v123
    %v327 = vunpack.c.l.b16 %v124
    %v328 = vunpack.c.l.b16 %v125
    %v329 = vunpack.c.l.b16 %v126
    %v330 = vunpack.c.l.b16 %v127
    %v331 = vunpack.c.l.b16 %v128
    %v332 = vunpack.c.l.b16 %v129
    %v333 = vunpack.c.l.b16 %v130
    %v334 = vunpack.c.l.b16 %v131
    %v335 = vunpack.c.l.b16 %v132
    %v336 = vunpack.c.l.b16 %v133
    %v337 = vunpack.c.l.b16 %v134
    %v338 = vunpack.c.l.b16 %v135
    %v339 = vunpack.c.l.b16 %v136
    %v340 = vunpack.c.l.b16 %v137
    %v341 = vunpack.c.l.b16 %v138
    %v342 = vunpack.c.l.b16 %v139
    %v343 = vunpack.c.l.b16 %v140
    %v344 = vunpack.c.l.b16 %v141
    %v345 = vunpack.c.l.b16 %v142
    %v346 = vunpack.c.l.b16 %v143
    %v347 = vunpack.c.l.b16 %v144
    %v348 = vunpack.c.l.b16 %v145
    %v349 = vunpack.c.l.b16 %v146
    %v350 = vunpack.c.l.b16 %v147
    %v351 = vunpack.c.l.b16 %v148
    %v352 = vunpack.c.l.b16 %v149
    %v353 = vunpack.c.l.b16 %v150
    %v354 = vunpack.c.l.b16 %v151
    %v355 = vunpack.c.l.b16 %v152
    %v356 = vpack.c.b16 %v259, %v258
    %v357 = vpack.c.b16 %v261, %v260
    %v358 = vpack.c.b16 %v263, %v262
    %v359 = vpack.c.b16 %v265, %v264
    %v360 = vpack.c.b16 %v267, %v266
    %v361 = vpack.c.b16 %v269, %v268
    %v362 = vpack.c.b16 %v271, %v270
    %v363 = vpack.c.b16 %v273, %v272
    %v364 = vpack.c.b16 %v275, %v274
    %v365 = vpack.c.b16 %v277, %v276
    %v366 = vpack.c.b16 %v279, %v278
    %v367 = vpack.c.b16 %v281, %v280
    %v368 = vpack.c.b16 %v283, %v282
    %v369 = vpack.c.b16 %v285, %v284
    %v370 = vpack.c.b16 %v287, %v286
    %v371 = vpack.c.b16 %v289, %v288
    %v372 = vpack.c.b16 %v291, %v290
    %v373 = vpack.c.b16 %v293, %v292
    %v374 = vpack.c.b16 %v295, %v294
    %v375 = vpack.c.b16 %v297, %v296
    %v376 = vpack.c.b16 %v299, %v298
    %v377 = vpack.c.b16 %v301, %v300
    %v378 = vpack.c.b16 %v303, %v302
    %v379 = vpack.c.b16 %v305, %v304
    %v380 = vpack.c.b16 %v307, %v306
    %v381 = vpack.c.b16 %v309, %v308
    %v382 = vpack.c.b16 %v311, %v310
    %v383 = vpack.c.b16 %v313, %v312
    %v384 = vpack.c.b16 %v315, %v314
    %v385 = vpack.c.b16 %v317, %v316
    %v386 = vpack.c.b16 %v319, %v318
    %v387 = vpack.c.b16 %v321, %v320
    %v388 = vpack.c.b16 %v323, %v322
    %v389 = vpack.c.b16 %v325, %v324
    %v390 = vpack.c.b16 %v327, %v326
    %v391 = vpack.c.b16 %v329, %v328
    %v392 = vpack.c.b16 %v331, %v330
    %v393 = vpack.c.b16 %v333, %v332
    %v394 = vpack.c.b16 %v335, %v334
    %v395 = vpack.c.b16 %v337, %v336
    %v396 = vpack.c.b16 %v339, %v338
    %v397 = vpack.c.b16 %v341, %v340
    %v398 = vpack.c.b16 %v343, %v342
    %v399 = vpack.c.b16 %v345, %v344
    %v400 = vpack.c.b16 %v347, %v346
    %v401 = vpack.c.b16 %v349, %v348
    %v402 = vpack.c.b16 %v351, %v350
    %v403 = vpack.c.b16 %v353, %v352
    %v404 = vpack.c.b16 %v355, %v354
    %vm454 = vcmask 130048
    %v456 = vsel %vm454, %v54, 0
    %458 = vmatprep.subr.bf16.mxu0 0
    %459 = vmatpush1.bf16.msra.mxu0 %v363
    %460 = vmatprep.subr.bf16.mxu0 0
    %461 = vmatpush1.bf16.msra.mxu0 %v362
    %462 = vmatprep.subr.bf16.mxu0 0
    %463 = vmatpush1.bf16.msra.mxu0 %v361
    %464 = vmatprep.subr.bf16.mxu0 0
    %465 = vmatpush1.bf16.msra.mxu0 %v360
    %466 = vmatprep.subr.bf16.mxu0 0
    %467 = vmatpush1.bf16.msra.mxu0 %v359
    %468 = vmatprep.subr.bf16.mxu0 0
    %469 = vmatpush1.bf16.msra.mxu0 %v358
    %470 = vmatprep.subr.bf16.mxu0 0
    %471 = vmatpush1.bf16.msra.mxu0 %v357
    %472 = vmatprep.subr.bf16.mxu0 0
    %473 = vmatpush1.bf16.msra.mxu0 %v356
    %474 = vmatprep.subr.bf16.mxu0 0
    %475 = vmatpush2.bf16.msra.mxu0 %v371
    %476 = vmatprep.subr.bf16.mxu0 0
    %477 = vmatpush2.bf16.msra.mxu0 %v370
    %478 = vmatprep.subr.bf16.mxu0 0
    %479 = vmatpush2.bf16.msra.mxu0 %v369
    %480 = vmatprep.subr.bf16.mxu0 0
    %481 = vmatpush2.bf16.msra.mxu0 %v368
    %482 = vmatprep.subr.bf16.mxu0 0
    %483 = vmatpush2.bf16.msra.mxu0 %v367
    %484 = vmatprep.subr.bf16.mxu0 0
    %485 = vmatpush2.bf16.msra.mxu0 %v366
    %486 = vmatprep.subr.bf16.mxu0 0
    %487 = vmatpush2.bf16.msra.mxu0 %v365
    %488 = vmatprep.subr.bf16.mxu0 0
    %489 = vmatpush2.bf16.msra.mxu0 %v364
    %490 = vmatprep.mubr.bf16.mxu0 %v49
    %491 = vmatmul.mubr.bf16.gmra.mxu0 %v48
    %v492 = vpop.f32.mrf.mxu0
    %v493 = vadd.f32 %v158, %v492
    %v494 = vpop.f32.mrf.mxu0
    %v495 = vpop.f32.mrf.mxu0
    %v496 = vpop.f32.mrf.mxu0
    %497 = vdwg.mxu0
    %498 = vmatprep.subr.bf16.mxu0 0
    %499 = vmatpush1.bf16.msra.mxu0 %v379
    %500 = vmatprep.subr.bf16.mxu0 0
    %501 = vmatpush1.bf16.msra.mxu0 %v378
    %502 = vmatprep.subr.bf16.mxu0 0
    %503 = vmatpush1.bf16.msra.mxu0 %v377
    %504 = vmatprep.subr.bf16.mxu0 0
    %505 = vmatpush1.bf16.msra.mxu0 %v376
    %506 = vmatprep.subr.bf16.mxu0 0
    %507 = vmatpush1.bf16.msra.mxu0 %v375
    %508 = vmatprep.subr.bf16.mxu0 0
    %509 = vmatpush1.bf16.msra.mxu0 %v374
    %510 = vmatprep.subr.bf16.mxu0 0
    %511 = vmatpush1.bf16.msra.mxu0 %v373
    %512 = vmatprep.subr.bf16.mxu0 0
    %513 = vmatpush1.bf16.msra.mxu0 %v372
    %514 = vmatprep.subr.bf16.mxu0 0
    %515 = vmatpush2.bf16.msra.mxu0 %v387
    %516 = vmatprep.subr.bf16.mxu0 0
    %517 = vmatpush2.bf16.msra.mxu0 %v386
    %518 = vmatprep.subr.bf16.mxu0 0
    %519 = vmatpush2.bf16.msra.mxu0 %v385
    %520 = vmatprep.subr.bf16.mxu0 0
    %521 = vmatpush2.bf16.msra.mxu0 %v384
    %522 = vmatprep.subr.bf16.mxu0 0
    %523 = vmatpush2.bf16.msra.mxu0 %v383
    %524 = vmatprep.subr.bf16.mxu0 0
    %525 = vmatpush2.bf16.msra.mxu0 %v382
    %526 = vmatprep.subr.bf16.mxu0 0
    %527 = vmatpush2.bf16.msra.mxu0 %v381
    %528 = vmatprep.subr.bf16.mxu0 0
    %529 = vmatpush2.bf16.msra.mxu0 %v380
    %530 = vmatprep.mubr.bf16.mxu0 %v51
    %531 = vmatmul.mubr.bf16.gmra.mxu0 %v50
    %v532 = vpop.f32.mrf.mxu0
    %v533 = vadd.f32 %v493, %v532
    %v534 = vpop.f32.mrf.mxu0
    %v535 = vpop.f32.mrf.mxu0
    %v536 = vpop.f32.mrf.mxu0
    %537 = vdwg.mxu0
    %538 = vmatprep.subr.bf16.mxu0 0
    %539 = vmatpush1.bf16.msra.mxu0 %v395
    %540 = vmatprep.subr.bf16.mxu0 0
    %541 = vmatpush1.bf16.msra.mxu0 %v394
    %542 = vmatprep.subr.bf16.mxu0 0
    %543 = vmatpush1.bf16.msra.mxu0 %v393
    %544 = vmatprep.subr.bf16.mxu0 0
    %545 = vmatpush1.bf16.msra.mxu0 %v392
    %546 = vmatprep.subr.bf16.mxu0 0
    %547 = vmatpush1.bf16.msra.mxu0 %v391
    %548 = vmatprep.subr.bf16.mxu0 0
    %549 = vmatpush1.bf16.msra.mxu0 %v390
    %550 = vmatprep.subr.bf16.mxu0 0
    %551 = vmatpush1.bf16.msra.mxu0 %v389
    %552 = vmatprep.subr.bf16.mxu0 0
    %553 = vmatpush1.bf16.msra.mxu0 %v388
    %554 = vmatprep.subr.bf16.mxu0 0
    %555 = vmatpush2.bf16.msra.mxu0 %v403
    %556 = vmatprep.subr.bf16.mxu0 0
    %557 = vmatpush2.bf16.msra.mxu0 %v402
    %558 = vmatprep.subr.bf16.mxu0 0
    %559 = vmatpush2.bf16.msra.mxu0 %v401
    %560 = vmatprep.subr.bf16.mxu0 0
    %561 = vmatpush2.bf16.msra.mxu0 %v400
    %562 = vmatprep.subr.bf16.mxu0 0
    %563 = vmatpush2.bf16.msra.mxu0 %v399
    %564 = vmatprep.subr.bf16.mxu0 0
    %565 = vmatpush2.bf16.msra.mxu0 %v398
    %566 = vmatprep.subr.bf16.mxu0 0
    %567 = vmatpush2.bf16.msra.mxu0 %v397
    %568 = vmatprep.subr.bf16.mxu0 0
    %569 = vmatpush2.bf16.msra.mxu0 %v396
    %570 = vmatprep.mubr.bf16.mxu0 %v53
    %571 = vmatmul.mubr.bf16.gmra.mxu0 %v52
    %v572 = vpop.f32.mrf.mxu0
    %v573 = vadd.f32 %v533, %v572
    %v574 = vpop.f32.mrf.mxu0
    %v575 = vpop.f32.mrf.mxu0
    %v576 = vpop.f32.mrf.mxu0
    %577 = vdwg.mxu0
    %578 = vmatprep.subr.bf16.mxu0 0
    %579 = vmatpush1.bf16.msra.mxu0 0
    %580 = vmatprep.subr.bf16.mxu0 0
    %581 = vmatpush1.bf16.msra.mxu0 0
    %582 = vmatprep.subr.bf16.mxu0 0
    %583 = vmatpush1.bf16.msra.mxu0 0
    %584 = vmatprep.subr.bf16.mxu0 0
    %585 = vmatpush1.bf16.msra.mxu0 0
    %586 = vmatprep.subr.bf16.mxu0 0
    %587 = vmatpush1.bf16.msra.mxu0 0
    %588 = vmatprep.subr.bf16.mxu0 0
    %589 = vmatpush1.bf16.msra.mxu0 0
    %590 = vmatprep.subr.bf16.mxu0 0
    %591 = vmatpush1.bf16.msra.mxu0 0
    %592 = vmatprep.subr.bf16.mxu0 0
    %593 = vmatpush1.bf16.msra.mxu0 %v404
    %594 = vmatprep.subr.bf16.mxu0 0
    %595 = vmatpush2.bf16.msra.mxu0 0
    %596 = vmatprep.subr.bf16.mxu0 0
    %597 = vmatpush2.bf16.msra.mxu0 0
    %598 = vmatprep.subr.bf16.mxu0 0
    %599 = vmatpush2.bf16.msra.mxu0 0
    %600 = vmatprep.subr.bf16.mxu0 0
    %601 = vmatpush2.bf16.msra.mxu0 0
    %602 = vmatprep.subr.bf16.mxu0 0
    %603 = vmatpush2.bf16.msra.mxu0 0
    %604 = vmatprep.subr.bf16.mxu0 0
    %605 = vmatpush2.bf16.msra.mxu0 0
    %606 = vmatprep.subr.bf16.mxu0 0
    %607 = vmatpush2.bf16.msra.mxu0 0
    %608 = vmatprep.subr.bf16.mxu0 0
    %609 = vmatpush2.bf16.msra.mxu0 0
    %610 = vmatprep.mubr.bf16.mxu0 0
    %611 = vmatmul.mubr.bf16.gmra.mxu0 %v456
    %v612 = vpop.f32.mrf.mxu0
    %v613 = vadd.f32 %v573, %v612
    %v614 = vpop.f32.mrf.mxu0
    %v615 = vpop.f32.mrf.mxu0
    %v616 = vpop.f32.mrf.mxu0
    %617 = vdwg.mxu0
    %v618 = vpack.c.bf16 %v613, %v613
    %619 = vst [vmem:[%s3] sm:$0xf] %v618
    // Predicated region
    $region22: #{encoder_forward.1} parent=1 // pred_check
      _
    $region23: #{encoder_forward.1} parent=1 // pred_check_branch
      %621 = sbr.rel (0) target = $region25
    $region24: #{encoder_forward.1} parent=1 // pred_region
      _
    $region25: #{encoder_forward.1} parent=1 // pred_fallthru
      _
    // Predicated region
    $region26: #{encoder_forward.1} parent=1 // pred_check
      _
    $region27: #{encoder_forward.1} parent=1 // pred_check_branch
      %623 = sbr.rel (0) target = $region29
    $region28: #{encoder_forward.1} parent=1 // pred_region
      _
    $region29: #{encoder_forward.1} parent=1 // pred_fallthru
      _
    %624 = vsyncpa [#allocation3], 1
    %625 = vsyncpa [#allocation5], 1

</llo_original>
